<compile_context>
chip_gen: v7x
topology: tpu7x:2x2x1
jax: 0.10.0
libtpu: 0.0.40
codegen_flags: <defaults>
</compile_context>

<pallas_src>
import jax
import jax.numpy as jnp
from jax.experimental import pallas as pl
from jax.experimental.pallas import tpu as pltpu


_LANE_CANDIDATES = (2048, 1024, 512, 256, 128)
_MAX_LANE_BYTES = 256 * 1024          # cap on one row of the ragged 2-D view
_TARGET_BLOCK_BYTES = 6 * 1024 * 1024  # ~6 MiB per grid step
_SUBLANE = 16                          # row multiple valid for f32 (8) and bf16 (16)


def _fake_quantize_kernel(params_ref, x_ref, o_ref):
    # params_ref lives in SMEM: [inv_scale, scale, zero_point, quant_min, quant_max]
    inv_scale = params_ref[0]
    scale = params_ref[1]
    zero_point = params_ref[2]
    quant_min = params_ref[3]
    quant_max = params_ref[4]
    x = x_ref[...].astype(jnp.float32)
    x_int = jnp.clip(jnp.floor(x * inv_scale + zero_point), quant_min, quant_max)
    o_ref[...] = ((x_int - zero_point) * scale).astype(o_ref.dtype)


def _choose_2d_view(shape, n, itemsize):
    """Pick a zero-copy (rows, lane) reshape of the flattened array, or None."""
    # Fast path: flat length divisible by a lane-dense width.
    for cand in _LANE_CANDIDATES:
        if n % cand == 0:
            return n // cand, cand
    # Ragged flat length: use the largest trailing-dim product whose row still
    # fits the byte cap.  The BlockSpec covers the full lane width, so it does
    # not need to be a multiple of 128 (full-dim exception).
    lane = None
    t = 1
    for d in reversed(shape):
        t *= int(d)
        if t * itemsize <= _MAX_LANE_BYTES:
            lane = t
    if lane is None:
        return None
    return n // lane, lane


def _tile_rows_for(rows, lane, itemsize):
    """Rows per block: ~_TARGET_BLOCK_BYTES, multiple of _SUBLANE (or full rows)."""
    bytes_per_row = max(1, lane * itemsize)
    tr = (_TARGET_BLOCK_BYTES // bytes_per_row) // _SUBLANE * _SUBLANE
    tr = max(_SUBLANE, tr)
    if tr >= rows:
        if rows >= 8 * _SUBLANE:
            # Split into >=4 grid steps so the pipeline double-buffers and the
            # row grid can shard across v7x's 2 TensorCores (cheap on 1-TC chips).
            tr = max(_SUBLANE, (rows // 4) // _SUBLANE * _SUBLANE)
        else:
            tr = rows  # tiny array: single block (full-dim block is always legal)
    return tr


def fake_quantize(x, scale=5.0 / 127, zero_point=128.0, quant_min=0.0,
                  quant_max=255.0, *, donate_input=False):
    """Pallas TPU implementation of FakeQuantize.forward for arbitrary-shaped x."""
    orig_shape = x.shape
    orig_dtype = x.dtype
    n = int(x.size)
    if n == 0:
        return x

    itemsize = jnp.dtype(orig_dtype).itemsize
    flat = x.reshape(-1)

    view = _choose_2d_view(orig_shape, n, itemsize)
    padded = False
    if view is None:
        # TODO(synk): last-resort pad path (costs extra HBM passes); only reached
        # when no trailing-dim product gives a usable lane (e.g. huge prime-length 1-D).
        lane = 1024
        n_pad = -(-n // lane) * lane
        flat = jnp.pad(flat, (0, n_pad - n))
        view = (n_pad // lane, lane)
        padded = True
    rows, lane = view
    x2d = flat.reshape(rows, lane)

    tile_rows = _tile_rows_for(rows, lane, itemsize)
    grid = (pl.cdiv(rows, tile_rows),)

    params = jnp.array(
        [1.0 / scale, scale, zero_point, quant_min, quant_max], dtype=jnp.float32)

    cost = pl.CostEstimate(
        flops=7 * n, transcendentals=0, bytes_accessed=2 * n * itemsize)

    out2d = pl.pallas_call(
        _fake_quantize_kernel,
        out_shape=jax.ShapeDtypeStruct((rows, lane), x2d.dtype),
        grid_spec=pltpu.PrefetchScalarGridSpec(
            num_scalar_prefetch=0,
            grid=grid,
            in_specs=[
                pl.BlockSpec(memory_space=pltpu.MemorySpace.SMEM),   # quant params
                pl.BlockSpec((tile_rows, lane), lambda i: (i, 0)),   # x slab
            ],
            out_specs=pl.BlockSpec((tile_rows, lane), lambda i: (i, 0)),
        ),
        compiler_params=pltpu.CompilerParams(
            dimension_semantics=("parallel",),
            vmem_limit_bytes=48 * 1024 * 1024,
        ),
        cost_estimate=cost,
        input_output_aliases=({1: 0} if donate_input else {}),
    )(params, x2d)

    out = out2d.reshape(-1)
    if padded:
        out = out[:n]
    return out.reshape(orig_shape).astype(orig_dtype)


def fake_quantize_ref(x, scale=5.0 / 127, zero_point=128.0, quant_min=0.0, quant_max=255.0):
    # Mirrors the kernel math (multiply by 1/scale).  Can differ from the torch
    # module's x / scale by one quantization step only on exact bin boundaries.
    x = x.astype(jnp.float32)
    x_int = jnp.clip(jnp.floor(x * (1.0 / scale) + zero_point), quant_min, quant_max)
    return (x_int - zero_point) * scale


if __name__ == "__main__":
    key = jax.random.PRNGKey(0)
    k1, k2, k3 = jax.random.split(key, 3)

    # Small NCHW activation tensor (zero-copy lane-dense fast path: n % 128 == 0).
    x = jax.random.normal(k1, (2, 4, 16, 16), dtype=jnp.float32) * 3.0
    y = jax.block_until_ready(fake_quantize(x))
    y_ref = fake_quantize_ref(x)
    assert y.shape == x.shape and y.dtype == x.dtype
    assert float(jnp.max(jnp.abs(y - y_ref))) < 1e-5

    # Ragged element count: zero-copy trailing-product view (no pad / no slice).
    x2 = jax.random.normal(k2, (3, 7, 33, 29), dtype=jnp.float32) * 3.0
    y2 = jax.block_until_ready(fake_quantize(x2))
    y2_ref = fake_quantize_ref(x2)
    assert y2.shape == x2.shape and y2.dtype == x2.dtype
    assert float(jnp.max(jnp.abs(y2 - y2_ref))) < 1e-5

    # bf16 input (compute in f32, store back in bf16).
    x3 = (jax.random.normal(k3, (2, 8, 32), dtype=jnp.float32) * 3.0).astype(jnp.bfloat16)
    y3 = jax.block_until_ready(fake_quantize(x3))
    y3_ref = fake_quantize_ref(x3).astype(jnp.bfloat16)
    assert y3.shape == x3.shape and y3.dtype == x3.dtype
    assert float(jnp.max(jnp.abs(y3.astype(jnp.float32) - y3_ref.astype(jnp.float32)))) < 2e-2

    print("KERNEL_OK")
</pallas_src>

<mosaic_0001>
module attributes {stable_mosaic.version = 11 : i64} {
  func.func @_fake_quantize_kernel(%arg0: i32, %arg1: memref<5xf32, #tpu.memory_space<smem>>, %arg2: memref<1x2048xf32, #tpu.memory_space<vmem>>, %arg3: memref<1x2048xf32, #tpu.memory_space<vmem>>) attributes {dimension_semantics = [#tpu.dimension_semantics<parallel>], iteration_bounds = array<i64: 1>, scalar_prefetch = 0 : i64, scratch_operands = 0 : i64, tpu.core_type = #tpu.core_type<tc>, window_params = [{transform_indices = @transform_0, window_bounds = array<i64: 5>}, {transform_indices = @transform_1, window_bounds = array<i64: 1, 2048>}, {transform_indices = @transform_2, window_bounds = array<i64: 1, 2048>}]} {
    %c0 = arith.constant 0 : index
    %0 = memref.load %arg1[%c0] : memref<5xf32, #tpu.memory_space<smem>>
    %c1 = arith.constant 1 : index
    %1 = memref.load %arg1[%c1] : memref<5xf32, #tpu.memory_space<smem>>
    %c2 = arith.constant 2 : index
    %2 = memref.load %arg1[%c2] : memref<5xf32, #tpu.memory_space<smem>>
    %c3 = arith.constant 3 : index
    %3 = memref.load %arg1[%c3] : memref<5xf32, #tpu.memory_space<smem>>
    %c4 = arith.constant 4 : index
    %4 = memref.load %arg1[%c4] : memref<5xf32, #tpu.memory_space<smem>>
    %c0_0 = arith.constant 0 : index
    %c0_1 = arith.constant 0 : index
    %5 = vector.load %arg2[%c0_0, %c0_1] : memref<1x2048xf32, #tpu.memory_space<vmem>>, vector<1x2048xf32>
    %6 = vector.broadcast %0 : f32 to vector<1x2048xf32>
    %7 = arith.mulf %5, %6 : vector<1x2048xf32>
    %8 = vector.broadcast %2 : f32 to vector<1x2048xf32>
    %9 = arith.addf %7, %8 : vector<1x2048xf32>
    %10 = math.floor %9 : vector<1x2048xf32>
    %11 = vector.broadcast %3 : f32 to vector<1x2048xf32>
    %12 = arith.maximumf %11, %10 : vector<1x2048xf32>
    %13 = vector.broadcast %4 : f32 to vector<1x2048xf32>
    %14 = arith.minimumf %13, %12 : vector<1x2048xf32>
    %15 = vector.broadcast %2 : f32 to vector<1x2048xf32>
    %16 = arith.subf %14, %15 : vector<1x2048xf32>
    %17 = vector.broadcast %1 : f32 to vector<1x2048xf32>
    %18 = arith.mulf %16, %17 : vector<1x2048xf32>
    %c0_2 = arith.constant 0 : index
    %c0_3 = arith.constant 0 : index
    %19 = vector.load %arg3[%c0_2, %c0_3] : memref<1x2048xf32, #tpu.memory_space<vmem>>, vector<1x2048xf32>
    tpu.vector_store %arg3[%c0_2, %c0_3], %18 {strides = array<i32>} : memref<1x2048xf32, #tpu.memory_space<vmem>>, vector<1x2048xf32>,
    return
  }
  func.func @transform_0(%arg0: i32) -> i32 {
    %c0_i32 = arith.constant 0 : i32
    %c0_i32_0 = arith.constant 0 : i32
    return %c0_i32 : i32
  }
  func.func @transform_1(%arg0: i32) -> (i32, i32) {
    %c0_i32 = arith.constant 0 : i32
    %c0_i32_0 = arith.constant 0 : i32
    return %arg0, %c0_i32 : i32, i32
  }
  func.func @transform_2(%arg0: i32) -> (i32, i32) {
    %c0_i32 = arith.constant 0 : i32
    %c0_i32_0 = arith.constant 0 : i32
    return %arg0, %c0_i32 : i32, i32
  }
}

</mosaic_0001>

<llo_original>
// kernel: tpu_custom_call.1
$region0: #{tpu_custom_call.1}
  #allocation0 [shape = 'u32[]', space=smem, size = 0x4, offset = 0x4, fixed_abs, tag = 'smem constant byte address 0x4 - core index']
  #allocation1 [shape = 'u32[144,128]{1,0:T(1,128)}', space=vmem, size = 0x12000, scoped, tag = 'internal scratch']
  %s0 = inlined_call_operand.hbm [shape: f32[5], index: 0, kind: input, shape index: {}]
  %s1 = inlined_call_operand.hbm [shape: f32[1,2048], index: 1, kind: input, shape index: {}]
  %s2 = inlined_call_operand.hbm [shape: f32[1,2048], index: 2, kind: output, shape index: {}]
  %s3 = sld [smem:[#allocation0]]
  $region26: #{tpu_custom_call.1} parent=0
    _
  %s5 = ssub.s32 1, %s3
  %s6 = scalar_select 0, %s5, %s3
  $region1: #{tpu_custom_call.1} parent=0
    #allocation2 [shape = 'u8[512]{0}', space=smem, size = 0x200, scoped, tag = 'input window, operand 0, single buffered']
    #allocation3 [shape = 's32[1]{0}', space=sflag, size = 0x4, scoped, tag = 'scoped memory for tpu_custom_call.1']
    #allocation4 [shape = 's32[1]{0}', space=sflag, size = 0x4, scoped, tag = 'scoped memory for tpu_custom_call.1']
    #allocation5 [shape = 's32[1]{0}', space=sflag, size = 0x4, scoped, tag = 'scoped memory for tpu_custom_call.1']
    #allocation6 [shape = 'u8[8192]{0}', space=vmem, size = 0x2000, scoped, tag = 'input window, operand 1, single buffered']
    #allocation7 [shape = 'u8[8192]{0}', space=vmem, size = 0x2000, scoped, tag = 'output window, operand 0, single buffered']
    %7 = vsyncpa [#allocation5], 0
    %8 = vsyncpa [#allocation3], 0
    %9 = vsyncpa [#allocation4], 0
    // Predicated region
    $region2: #{tpu_custom_call.1} parent=1 // pred_check
      _
    $region3: #{tpu_custom_call.1} parent=1 // pred_check_branch
      %11 = sbr.rel (0) target = $region5
    $region4: #{tpu_custom_call.1} parent=1 // pred_region
      %s13 = ssub.s32 16, 16
      %14 = vsyncadd [#allocation5], %s13
      %17 = dma.hbm_to_smem %s0, 16, [#allocation2], [#allocation5]
    $region5: #{tpu_custom_call.1} parent=1 // pred_fallthru
      _
    // Predicated region
    $region6: #{tpu_custom_call.1} parent=1 // pred_check
      _
    $region7: #{tpu_custom_call.1} parent=1 // pred_check_branch
      %19 = sbr.rel (0) target = $region9
    $region8: #{tpu_custom_call.1} parent=1 // pred_region
      %s21 = ssub.s32 256, 256
      %22 = vsyncadd [#allocation3], %s21
      %s24 = sshll.u32 [#allocation6], 4
      %s25 = int_to_ptr.vmem [resolvable:$true] %s24
      %27 = dma.hbm_to_vmem [thread:$0]  %s1, 256, %s25, [#allocation3]
    $region9: #{tpu_custom_call.1} parent=1 // pred_fallthru
      _
    // Predicated region
    $region10: #{tpu_custom_call.1} parent=1 // pred_check
      _
    $region11: #{tpu_custom_call.1} parent=1 // pred_check_branch
      %29 = sbr.rel (0) target = $region13
    $region12: #{tpu_custom_call.1} parent=1 // pred_region
      %30 = dma.done [#allocation5], 16
    $region13: #{tpu_custom_call.1} parent=1 // pred_fallthru
      _
    // Predicated region
    $region14: #{tpu_custom_call.1} parent=1 // pred_check
      _
    $region15: #{tpu_custom_call.1} parent=1 // pred_check_branch
      %32 = sbr.rel (0) target = $region17
    $region16: #{tpu_custom_call.1} parent=1 // pred_region
      %33 = dma.done [#allocation3], 256
    $region17: #{tpu_custom_call.1} parent=1 // pred_fallthru
      _
    %34 = sfence
    %s35 = sld [smem:[#allocation2]]
    %s36 = sld [smem:[#allocation2 + $0x1]]
    %s37 = sld [smem:[#allocation2 + $0x2]]
    %s38 = sld [smem:[#allocation2 + $0x3]]
    %s39 = sld [smem:[#allocation2 + $0x4]]
    %v40 = vld [vmem:[#allocation6] sm:$0xff]
    %v41 = vld [vmem:[#allocation6 + $0x8] sm:$0xff]
    %v42 = vstv %s35
    %v43 = vmul.f32 %v40, %v42
    %v44 = vmul.f32 %v41, %v42
    %v45 = vstv %s37
    %v46 = vadd.f32 %v43, %v45
    %v47 = vadd.f32 %v44, %v45
    %v48 = vfloor.f32 %v46
    %v49 = vfloor.f32 %v47
    %v50 = vstv %s38
    %v51 = vmax.f32 %v50, %v48
    %v52 = vmax.f32 %v50, %v49
    %v53 = vstv %s39
    %v54 = vmin.f32 %v53, %v51
    %v55 = vmin.f32 %v53, %v52
    %v56 = vsub.f32 %v54, %v45
    %v57 = vsub.f32 %v55, %v45
    %v58 = vstv %s36
    %v59 = vmul.f32 %v56, %v58
    %v60 = vmul.f32 %v57, %v58
    %61 = vst [vmem:[#allocation7] sm:$0xff] %v59
    %62 = vst [vmem:[#allocation7 + $0x8] sm:$0xff] %v60
    // Predicated region
    $region18: #{tpu_custom_call.1} parent=1 // pred_check
      _
    $region19: #{tpu_custom_call.1} parent=1 // pred_check_branch
      %64 = sbr.rel (0) target = $region21
    $region20: #{tpu_custom_call.1} parent=1 // pred_region
      %s66 = ssub.s32 256, 256
      %67 = vsyncadd [#allocation4], %s66
      %s69 = sshll.u32 [#allocation7], 4
      %s70 = int_to_ptr.vmem [resolvable:$true] %s69
      %72 = dma.vmem_to_hbm [thread:$0]  %s70, 256, %s2, [#allocation4]
    $region21: #{tpu_custom_call.1} parent=1 // pred_fallthru
      _
    // Predicated region
    $region22: #{tpu_custom_call.1} parent=1 // pred_check
      _
    $region23: #{tpu_custom_call.1} parent=1 // pred_check_branch
      %74 = sbr.rel (0) target = $region25
    $region24: #{tpu_custom_call.1} parent=1 // pred_region
      %75 = dma.done [#allocation4], 256
    $region25: #{tpu_custom_call.1} parent=1 // pred_fallthru
      _
    %76 = vsyncpa [#allocation3], 1
    %77 = vsyncpa [#allocation4], 1
    %78 = vsyncpa [#allocation5], 1

</llo_original>
